<compile_context>
chip_gen: v6e
topology: v6e:2x2x1
jax: 0.10.0
libtpu: 0.0.40
codegen_flags: <defaults>
</compile_context>

<pallas_src>
import functools

import jax
import jax.numpy as jnp
from jax.experimental import pallas as pl
from jax.experimental.pallas import tpu as pltpu


def _round_up(n, m):
    return ((n + m - 1) // m) * m


def vae_kernel(x_ref, eps_ref,
               w0_ref, b0_ref,
               wmv_ref, bmv_ref,
               wd_ref, bd_ref,
               wg_ref, bg_ref,
               y_ref, *, z_dim):
    """Fused VAE forward for one tile of `tm` samples (feature-major layout).

    All activations are (feature, tm) with tm a multiple of 128, so every
    elementwise op and the output store are lane-dense.  Matmul operands may
    be bf16; accumulation, tanh, exp and the reparameterization are f32.
    """
    w_dtype = w0_ref.dtype
    x = x_ref[...]                                                  # (x_dim, tm)

    # Encoder MLP: h = tanh(W0 @ x + b0)          (dropout_p = 0 -> identity)
    h = jnp.tanh(
        jnp.dot(w0_ref[...], x, preferred_element_type=jnp.float32)
        + b0_ref[...])                                              # (hid, tm) f32

    # Fused bottleneck: single matmul produces [z_mean ; z_logvar]
    zmv = jnp.dot(wmv_ref[...], h.astype(w_dtype),
                  preferred_element_type=jnp.float32) + bmv_ref[...]  # (2z, tm)
    z_mean = zmv[:z_dim, :]
    z_logvar = zmv[z_dim:, :]

    # Reparameterization (torch.addcmul): z = mean + eps * exp(0.5 * logvar)
    z = z_mean + eps_ref[...] * jnp.exp(0.5 * z_logvar)            # (z_dim, tm)

    # Decoder MLP: hz = tanh(Wd @ z + bd)
    hz = jnp.tanh(
        jnp.dot(wd_ref[...], z.astype(w_dtype),
                preferred_element_type=jnp.float32) + bd_ref[...])  # (hid, tm)

    # Output head: y = exp(Wg @ hz + bg)
    log_y = jnp.dot(wg_ref[...], hz.astype(w_dtype),
                    preferred_element_type=jnp.float32) + bg_ref[...]  # (x_dim, tm)
    y_ref[...] = jnp.exp(log_y)


@functools.partial(jax.jit, static_argnames=("tm", "use_bf16"))
def vae_forward(x, eps, params, tm=1024, use_bf16=True):
    """x: (seq, batch, x_dim) f32, eps: (seq, batch, z_dim) f32 (~N(0,1))."""
    seq, batch, x_dim = x.shape
    z_dim = eps.shape[-1]
    hid = params["w0"].shape[0]
    N = seq * batch

    # Tile choice: big lane-dense tiles (multiple of 128 lanes), but aim for
    # ~8 grid steps when N is large (v7x megacore sharding + pipelining).
    tm_eff = min(tm, max(128, _round_up(pl.cdiv(N, 8), 128)))
    N_pad = _round_up(_round_up(N, 128), tm_eff)
    grid = N_pad // tm_eff

    # Feature-major layout: features on sublanes, samples on lanes (pad lanes).
    w_dtype = jnp.bfloat16 if use_bf16 else jnp.float32
    x_fm = jnp.pad(x.reshape(N, x_dim), ((0, N_pad - N), (0, 0))).T.astype(w_dtype)
    eps_fm = jnp.pad(eps.reshape(N, z_dim), ((0, N_pad - N), (0, 0))).T

    # Weights kept in torch layout (out_features, in_features); biases (out, 1).
    w0 = params["w0"].astype(w_dtype)
    wmv = jnp.concatenate([params["wm"], params["wv"]], axis=0).astype(w_dtype)
    bmv = jnp.concatenate([params["bm"], params["bv"]], axis=0)
    wd = params["wd"].astype(w_dtype)
    wg = params["wg"].astype(w_dtype)

    col_spec = lambda d: pl.BlockSpec((d, tm_eff), lambda i: (0, i))  # tiled over samples
    rep_spec = lambda s: pl.BlockSpec(s, lambda i: (0, 0))            # resident weights

    flops = 2 * N_pad * (x_dim * hid + hid * 2 * z_dim + z_dim * hid + hid * x_dim)
    transcendentals = N_pad * (2 * hid + z_dim + x_dim)
    bytes_accessed = (x_fm.size * x_fm.dtype.itemsize
                      + eps_fm.size * 4
                      + N_pad * x_dim * 4
                      + sum(a.size * a.dtype.itemsize
                            for a in (w0, wmv, wd, wg,
                                      params["b0"], bmv, params["bd"], params["bg"])))

    y_fm = pl.pallas_call(
        functools.partial(vae_kernel, z_dim=z_dim),
        out_shape=jax.ShapeDtypeStruct((x_dim, N_pad), jnp.float32),
        grid=(grid,),
        in_specs=[
            col_spec(x_dim),             # x   (feature-major)
            col_spec(z_dim),             # eps (feature-major)
            rep_spec((hid, x_dim)),      # W0
            rep_spec((hid, 1)),          # b0
            rep_spec((2 * z_dim, hid)),  # [Wm ; Wv]
            rep_spec((2 * z_dim, 1)),    # [bm ; bv]
            rep_spec((hid, z_dim)),      # Wd
            rep_spec((hid, 1)),          # bd
            rep_spec((x_dim, hid)),      # Wg
            rep_spec((x_dim, 1)),        # bg
        ],
        out_specs=col_spec(x_dim),
        compiler_params=pltpu.CompilerParams(dimension_semantics=("parallel",)),
        cost_estimate=pl.CostEstimate(flops=flops,
                                      transcendentals=transcendentals,
                                      bytes_accessed=bytes_accessed),
    )(x_fm, eps_fm,
      w0, params["b0"], wmv, bmv, wd, params["bd"], wg, params["bg"])

    # Back to (seq, batch, x_dim); forward() returns self.y = y.squeeze()
    y = y_fm[:, :N].T.reshape(seq, batch, x_dim)
    return jnp.squeeze(y)


def init_linear(key, fan_in, fan_out):
    """Deterministic init mimicking nn.Linear (uniform +-1/sqrt(fan_in)).
    Weight stored in torch layout (out, in); bias stored as (out, 1)."""
    kw, kb = jax.random.split(key)
    bound = 1.0 / jnp.sqrt(fan_in)
    w = jax.random.uniform(kw, (fan_out, fan_in), jnp.float32, -bound, bound)
    b = jax.random.uniform(kb, (fan_out, 1), jnp.float32, -bound, bound)
    return w, b


def make_params(key, x_dim, z_dim, hidden):
    k = jax.random.split(key, 5)
    w0, b0 = init_linear(k[0], x_dim, hidden)   # mlp_x_z.linear0
    wm, bm = init_linear(k[1], hidden, z_dim)   # inf_mean
    wv, bv = init_linear(k[2], hidden, z_dim)   # inf_logvar
    wd, bd = init_linear(k[3], z_dim, hidden)   # mlp_z_x.linear0
    wg, bg = init_linear(k[4], hidden, x_dim)   # gen_logvar
    return dict(w0=w0, b0=b0, wm=wm, bm=bm, wv=wv, bv=bv,
                wd=wd, bd=bd, wg=wg, bg=bg)


def vae_reference(x, eps, p, w_dtype=jnp.float32):
    """Pure-JAX reference of the same forward pass (row-major over samples)."""
    def lin(a, w, b):
        return jnp.dot(a.astype(w_dtype), w.T.astype(w_dtype),
                       preferred_element_type=jnp.float32) + b[:, 0]
    h = jnp.tanh(lin(x, p["w0"], p["b0"]))
    z_mean = lin(h, p["wm"], p["bm"])
    z_logvar = lin(h, p["wv"], p["bv"])
    z = z_mean + eps * jnp.exp(0.5 * z_logvar)
    hz = jnp.tanh(lin(z, p["wd"], p["bd"]))
    return jnp.squeeze(jnp.exp(lin(hz, p["wg"], p["bg"])))


if __name__ == "__main__":
    # Small shapes consistent with the module: x of shape (seq_len, batch, x_dim)
    seq_len, batch, x_dim = 8, 16, 32
    z_dim, hidden = 16, 128          # z_dim=16, dense_x_z=[128] (module defaults)

    root = jax.random.PRNGKey(0)
    k_param, k_x, k_eps = jax.random.split(root, 3)

    params = make_params(k_param, x_dim, z_dim, hidden)
    x = jax.random.normal(k_x, (seq_len, batch, x_dim), jnp.float32)
    # eps plays the role of torch.randn_like(std) in reparameterization;
    # drawn outside the kernel for determinism, consumed inside it.
    eps = jax.random.normal(k_eps, (seq_len, batch, z_dim), jnp.float32)

    # Exact-semantics check: f32 matmul path must match the f32 reference tightly.
    y_f32 = vae_forward(x, eps, params, use_bf16=False)
    jax.block_until_ready(y_f32)
    y_ref = vae_reference(x, eps, params)
    assert y_f32.shape == (seq_len, batch, x_dim)
    assert jnp.allclose(y_f32, y_ref, rtol=1e-5, atol=1e-5)

    # Performance path: bf16 MXU operands, f32 accumulation / elementwise.
    y = vae_forward(x, eps, params)  # use_bf16=True
    jax.block_until_ready(y)
    assert y.shape == (seq_len, batch, x_dim)
    assert jnp.allclose(y, y_ref, rtol=5e-2, atol=5e-2)

    print("KERNEL_OK")
</pallas_src>

<mosaic_0001>
module attributes {stable_mosaic.version = 11 : i64} {
  func.func @vae_kernel(%arg0: i32, %arg1: memref<32x128xf32, #tpu.memory_space<vmem>>, %arg2: memref<16x128xf32, #tpu.memory_space<vmem>>, %arg3: memref<128x32xf32, #tpu.memory_space<vmem>>, %arg4: memref<128x1xf32, #tpu.memory_space<vmem>>, %arg5: memref<32x128xf32, #tpu.memory_space<vmem>>, %arg6: memref<32x1xf32, #tpu.memory_space<vmem>>, %arg7: memref<128x16xf32, #tpu.memory_space<vmem>>, %arg8: memref<128x1xf32, #tpu.memory_space<vmem>>, %arg9: memref<32x128xf32, #tpu.memory_space<vmem>>, %arg10: memref<32x1xf32, #tpu.memory_space<vmem>>, %arg11: memref<32x128xf32, #tpu.memory_space<vmem>>) attributes {dimension_semantics = [#tpu.dimension_semantics<parallel>], iteration_bounds = array<i64: 1>, scalar_prefetch = 0 : i64, scratch_operands = 0 : i64, tpu.core_type = #tpu.core_type<tc>, window_params = [{transform_indices = @transform_0, window_bounds = array<i64: 32, 128>}, {transform_indices = @transform_1, window_bounds = array<i64: 16, 128>}, {pipeline_mode = #tpu.pipeline_mode<synchronous>, transform_indices = @transform_2, window_bounds = array<i64: 128, 32>}, {pipeline_mode = #tpu.pipeline_mode<synchronous>, transform_indices = @transform_3, window_bounds = array<i64: 128, 1>}, {pipeline_mode = #tpu.pipeline_mode<synchronous>, transform_indices = @transform_4, window_bounds = array<i64: 32, 128>}, {pipeline_mode = #tpu.pipeline_mode<synchronous>, transform_indices = @transform_5, window_bounds = array<i64: 32, 1>}, {pipeline_mode = #tpu.pipeline_mode<synchronous>, transform_indices = @transform_6, window_bounds = array<i64: 128, 16>}, {pipeline_mode = #tpu.pipeline_mode<synchronous>, transform_indices = @transform_7, window_bounds = array<i64: 128, 1>}, {pipeline_mode = #tpu.pipeline_mode<synchronous>, transform_indices = @transform_8, window_bounds = array<i64: 32, 128>}, {pipeline_mode = #tpu.pipeline_mode<synchronous>, transform_indices = @transform_9, window_bounds = array<i64: 32, 1>}, {transform_indices = @transform_10, window_bounds = array<i64: 32, 128>}]} {
    %c0 = arith.constant 0 : index
    %c0_0 = arith.constant 0 : index
    %0 = vector.load %arg1[%c0, %c0_0] : memref<32x128xf32, #tpu.memory_space<vmem>>, vector<32x128xf32>
    %c0_1 = arith.constant 0 : index
    %c0_2 = arith.constant 0 : index
    %1 = vector.load %arg3[%c0_1, %c0_2] : memref<128x32xf32, #tpu.memory_space<vmem>>, vector<128x32xf32>
    %cst = arith.constant dense<0.000000e+00> : vector<128x128xf32>
    %2 = tpu.matmul %1, %0, %cst {dimension_numbers = #tpu.dot_dimension_numbers<[1], [0], [0], [1], [0, 0, 1, 1], [], []>} : vector<128x32xf32>, vector<32x128xf32>, vector<128x128xf32> -> vector<128x128xf32>
    %c0_3 = arith.constant 0 : index
    %c0_4 = arith.constant 0 : index
    %3 = vector.load %arg4[%c0_3, %c0_4] : memref<128x1xf32, #tpu.memory_space<vmem>>, vector<128x1xf32>
    %4 = vector.broadcast %3 : vector<128x1xf32> to vector<128x128xf32>
    %5 = arith.addf %2, %4 : vector<128x128xf32>
    %6 = math.tanh %5 : vector<128x128xf32>
    %c0_5 = arith.constant 0 : index
    %c0_6 = arith.constant 0 : index
    %7 = vector.load %arg5[%c0_5, %c0_6] : memref<32x128xf32, #tpu.memory_space<vmem>>, vector<32x128xf32>
    %cst_7 = arith.constant dense<0.000000e+00> : vector<32x128xf32>
    %8 = tpu.matmul %7, %6, %cst_7 {dimension_numbers = #tpu.dot_dimension_numbers<[1], [0], [0], [1], [0, 0, 1, 1], [], []>} : vector<32x128xf32>, vector<128x128xf32>, vector<32x128xf32> -> vector<32x128xf32>
    %c0_8 = arith.constant 0 : index
    %c0_9 = arith.constant 0 : index
    %9 = vector.load %arg6[%c0_8, %c0_9] : memref<32x1xf32, #tpu.memory_space<vmem>>, vector<32x1xf32>
    %10 = vector.broadcast %9 : vector<32x1xf32> to vector<32x128xf32>
    %11 = arith.addf %8, %10 : vector<32x128xf32>
    %12 = vector.extract_strided_slice %11 {offsets = [0, 0], sizes = [16, 128], strides = [1, 1]} : vector<32x128xf32> to vector<16x128xf32>
    %13 = vector.extract_strided_slice %11 {offsets = [16, 0], sizes = [16, 128], strides = [1, 1]} : vector<32x128xf32> to vector<16x128xf32>
    %c0_10 = arith.constant 0 : index
    %c0_11 = arith.constant 0 : index
    %14 = vector.load %arg2[%c0_10, %c0_11] : memref<16x128xf32, #tpu.memory_space<vmem>>, vector<16x128xf32>
    %cst_12 = arith.constant 5.000000e-01 : f32
    %15 = vector.broadcast %cst_12 : f32 to vector<16x128xf32>
    %16 = arith.mulf %15, %13 : vector<16x128xf32>
    %17 = math.exp %16 : vector<16x128xf32>
    %18 = arith.mulf %14, %17 : vector<16x128xf32>
    %19 = arith.addf %12, %18 : vector<16x128xf32>
    %c0_13 = arith.constant 0 : index
    %c0_14 = arith.constant 0 : index
    %20 = vector.load %arg7[%c0_13, %c0_14] : memref<128x16xf32, #tpu.memory_space<vmem>>, vector<128x16xf32>
    %cst_15 = arith.constant dense<0.000000e+00> : vector<128x128xf32>
    %21 = tpu.matmul %20, %19, %cst_15 {dimension_numbers = #tpu.dot_dimension_numbers<[1], [0], [0], [1], [0, 0, 1, 1], [], []>} : vector<128x16xf32>, vector<16x128xf32>, vector<128x128xf32> -> vector<128x128xf32>
    %c0_16 = arith.constant 0 : index
    %c0_17 = arith.constant 0 : index
    %22 = vector.load %arg8[%c0_16, %c0_17] : memref<128x1xf32, #tpu.memory_space<vmem>>, vector<128x1xf32>
    %23 = vector.broadcast %22 : vector<128x1xf32> to vector<128x128xf32>
    %24 = arith.addf %21, %23 : vector<128x128xf32>
    %25 = math.tanh %24 : vector<128x128xf32>
    %c0_18 = arith.constant 0 : index
    %c0_19 = arith.constant 0 : index
    %26 = vector.load %arg9[%c0_18, %c0_19] : memref<32x128xf32, #tpu.memory_space<vmem>>, vector<32x128xf32>
    %cst_20 = arith.constant dense<0.000000e+00> : vector<32x128xf32>
    %27 = tpu.matmul %26, %25, %cst_20 {dimension_numbers = #tpu.dot_dimension_numbers<[1], [0], [0], [1], [0, 0, 1, 1], [], []>} : vector<32x128xf32>, vector<128x128xf32>, vector<32x128xf32> -> vector<32x128xf32>
    %c0_21 = arith.constant 0 : index
    %c0_22 = arith.constant 0 : index
    %28 = vector.load %arg10[%c0_21, %c0_22] : memref<32x1xf32, #tpu.memory_space<vmem>>, vector<32x1xf32>
    %29 = vector.broadcast %28 : vector<32x1xf32> to vector<32x128xf32>
    %30 = arith.addf %27, %29 : vector<32x128xf32>
    %31 = math.exp %30 : vector<32x128xf32>
    %c0_23 = arith.constant 0 : index
    %c0_24 = arith.constant 0 : index
    %32 = vector.load %arg11[%c0_23, %c0_24] : memref<32x128xf32, #tpu.memory_space<vmem>>, vector<32x128xf32>
    tpu.vector_store %arg11[%c0_23, %c0_24], %31 {strides = array<i32>} : memref<32x128xf32, #tpu.memory_space<vmem>>, vector<32x128xf32>,
    return
  }
  func.func @transform_0(%arg0: i32) -> (i32, i32) {
    %c0_i32 = arith.constant 0 : i32
    %c0_i32_0 = arith.constant 0 : i32
    return %c0_i32, %arg0 : i32, i32
  }
  func.func @transform_1(%arg0: i32) -> (i32, i32) {
    %c0_i32 = arith.constant 0 : i32
    %c0_i32_0 = arith.constant 0 : i32
    return %c0_i32, %arg0 : i32, i32
  }
  func.func @transform_2(%arg0: i32) -> (i32, i32) {
    %c0_i32 = arith.constant 0 : i32
    %c0_i32_0 = arith.constant 0 : i32
    %c0_i32_1 = arith.constant 0 : i32
    return %c0_i32, %c0_i32_0 : i32, i32
  }
  func.func @transform_3(%arg0: i32) -> (i32, i32) {
    %c0_i32 = arith.constant 0 : i32
    %c0_i32_0 = arith.constant 0 : i32
    %c0_i32_1 = arith.constant 0 : i32
    return %c0_i32, %c0_i32_0 : i32, i32
  }
  func.func @transform_4(%arg0: i32) -> (i32, i32) {
    %c0_i32 = arith.constant 0 : i32
    %c0_i32_0 = arith.constant 0 : i32
    %c0_i32_1 = arith.constant 0 : i32
    return %c0_i32, %c0_i32_0 : i32, i32
  }
  func.func @transform_5(%arg0: i32) -> (i32, i32) {
    %c0_i32 = arith.constant 0 : i32
    %c0_i32_0 = arith.constant 0 : i32
    %c0_i32_1 = arith.constant 0 : i32
    return %c0_i32, %c0_i32_0 : i32, i32
  }
  func.func @transform_6(%arg0: i32) -> (i32, i32) {
    %c0_i32 = arith.constant 0 : i32
    %c0_i32_0 = arith.constant 0 : i32
    %c0_i32_1 = arith.constant 0 : i32
    return %c0_i32, %c0_i32_0 : i32, i32
  }
  func.func @transform_7(%arg0: i32) -> (i32, i32) {
    %c0_i32 = arith.constant 0 : i32
    %c0_i32_0 = arith.constant 0 : i32
    %c0_i32_1 = arith.constant 0 : i32
    return %c0_i32, %c0_i32_0 : i32, i32
  }
  func.func @transform_8(%arg0: i32) -> (i32, i32) {
    %c0_i32 = arith.constant 0 : i32
    %c0_i32_0 = arith.constant 0 : i32
    %c0_i32_1 = arith.constant 0 : i32
    return %c0_i32, %c0_i32_0 : i32, i32
  }
  func.func @transform_9(%arg0: i32) -> (i32, i32) {
    %c0_i32 = arith.constant 0 : i32
    %c0_i32_0 = arith.constant 0 : i32
    %c0_i32_1 = arith.constant 0 : i32
    return %c0_i32, %c0_i32_0 : i32, i32
  }
  func.func @transform_10(%arg0: i32) -> (i32, i32) {
    %c0_i32 = arith.constant 0 : i32
    %c0_i32_0 = arith.constant 0 : i32
    return %c0_i32, %arg0 : i32, i32
  }
}

</mosaic_0001>

<llo_original>
// kernel: vae_forward.1
$region0: #{vae_forward.1}
  #allocation0 [shape = 'u32[]', space=smem, size = 0x4, offset = 0x4, fixed_abs, tag = 'smem constant byte address 0x4 - core index']
  #allocation1 [shape = 'u32[144,128]{1,0:T(1,128)}', space=vmem, size = 0x12000, scoped, tag = 'internal scratch']
  %s0 = inlined_call_operand.vmem [shape: f32[32,128], index: 0, kind: input, shape index: {}]
  %s1 = inlined_call_operand.vmem [shape: f32[16,128], index: 1, kind: input, shape index: {}]
  %s2 = inlined_call_operand.vmem [shape: f32[128,32], index: 2, kind: input, shape index: {}]
  %s3 = inlined_call_operand.vmem [shape: f32[128,1], index: 3, kind: input, shape index: {}]
  %s4 = inlined_call_operand.vmem [shape: f32[32,128], index: 4, kind: input, shape index: {}]
  %s5 = inlined_call_operand.vmem [shape: f32[32,1], index: 5, kind: input, shape index: {}]
  %s6 = inlined_call_operand.vmem [shape: f32[128,16], index: 6, kind: input, shape index: {}]
  %s7 = inlined_call_operand.vmem [shape: f32[128,1], index: 7, kind: input, shape index: {}]
  %s8 = inlined_call_operand.vmem [shape: f32[32,128], index: 8, kind: input, shape index: {}]
  %s9 = inlined_call_operand.vmem [shape: f32[32,1], index: 9, kind: input, shape index: {}]
  %s10 = inlined_call_operand.vmem [shape: f32[32,128], index: 10, kind: output, shape index: {}]
  %s11 = sld [smem:[#allocation0]]
  $region50: #{vae_forward.1} parent=0
    _
  %s13 = ssub.s32 1, %s11
  %s14 = scalar_select 0, %s13, %s11
  // Predicated region
  $region2: #{vae_forward.1} parent=0 // pred_check
    _
  $region3: #{vae_forward.1} parent=0 // pred_check_branch
    %16 = sbr.rel (0) target = $region5
  $region4: #{vae_forward.1} parent=0 // pred_region
    _
  $region5: #{vae_forward.1} parent=0 // pred_fallthru
    _
  // Predicated region
  $region6: #{vae_forward.1} parent=0 // pred_check
    _
  $region7: #{vae_forward.1} parent=0 // pred_check_branch
    %18 = sbr.rel (0) target = $region9
  $region8: #{vae_forward.1} parent=0 // pred_region
    _
  $region9: #{vae_forward.1} parent=0 // pred_fallthru
    _
  // Predicated region
  $region10: #{vae_forward.1} parent=0 // pred_check
    _
  $region11: #{vae_forward.1} parent=0 // pred_check_branch
    %20 = sbr.rel (0) target = $region13
  $region12: #{vae_forward.1} parent=0 // pred_region
    _
  $region13: #{vae_forward.1} parent=0 // pred_fallthru
    _
  // Predicated region
  $region14: #{vae_forward.1} parent=0 // pred_check
    _
  $region15: #{vae_forward.1} parent=0 // pred_check_branch
    %22 = sbr.rel (0) target = $region17
  $region16: #{vae_forward.1} parent=0 // pred_region
    _
  $region17: #{vae_forward.1} parent=0 // pred_fallthru
    _
  // Predicated region
  $region18: #{vae_forward.1} parent=0 // pred_check
    _
  $region19: #{vae_forward.1} parent=0 // pred_check_branch
    %24 = sbr.rel (0) target = $region21
  $region20: #{vae_forward.1} parent=0 // pred_region
    _
  $region21: #{vae_forward.1} parent=0 // pred_fallthru
    _
  // Predicated region
  $region22: #{vae_forward.1} parent=0 // pred_check
    _
  $region23: #{vae_forward.1} parent=0 // pred_check_branch
    %26 = sbr.rel (0) target = $region25
  $region24: #{vae_forward.1} parent=0 // pred_region
    _
  $region25: #{vae_forward.1} parent=0 // pred_fallthru
    _
  // Predicated region
  $region26: #{vae_forward.1} parent=0 // pred_check
    _
  $region27: #{vae_forward.1} parent=0 // pred_check_branch
    %28 = sbr.rel (0) target = $region29
  $region28: #{vae_forward.1} parent=0 // pred_region
    _
  $region29: #{vae_forward.1} parent=0 // pred_fallthru
    _
  // Predicated region
  $region30: #{vae_forward.1} parent=0 // pred_check
    _
  $region31: #{vae_forward.1} parent=0 // pred_check_branch
    %30 = sbr.rel (0) target = $region33
  $region32: #{vae_forward.1} parent=0 // pred_region
    _
  $region33: #{vae_forward.1} parent=0 // pred_fallthru
    _
  // Predicated region
  $region34: #{vae_forward.1} parent=0 // pred_check
    _
  $region35: #{vae_forward.1} parent=0 // pred_check_branch
    %32 = sbr.rel (0) target = $region37
  $region36: #{vae_forward.1} parent=0 // pred_region
    _
  $region37: #{vae_forward.1} parent=0 // pred_fallthru
    _
  // Predicated region
  $region38: #{vae_forward.1} parent=0 // pred_check
    _
  $region39: #{vae_forward.1} parent=0 // pred_check_branch
    %34 = sbr.rel (0) target = $region41
  $region40: #{vae_forward.1} parent=0 // pred_region
    _
  $region41: #{vae_forward.1} parent=0 // pred_fallthru
    _
  %v35 = vld [vmem:[%s0] sm:$0xff]
  %v36 = vld [vmem:[%s0 + $0x8] sm:$0xff]
  %v37 = vld [vmem:[%s0 + $0x10] sm:$0xff]
  %v38 = vld [vmem:[%s0 + $0x18] sm:$0xff]
  %v39 = vld [vmem:[%s2] sm:$0xff]
  %v40 = vld [vmem:[%s2 + $0x8] sm:$0xff]
  %v41 = vld [vmem:[%s2 + $0x10] sm:$0xff]
  %v42 = vld [vmem:[%s2 + $0x18] sm:$0xff]
  %v43 = vld [vmem:[%s2 + $0x20] sm:$0xff]
  %v44 = vld [vmem:[%s2 + $0x28] sm:$0xff]
  %v45 = vld [vmem:[%s2 + $0x30] sm:$0xff]
  %v46 = vld [vmem:[%s2 + $0x38] sm:$0xff]
  %v47 = vld [vmem:[%s2 + $0x40] sm:$0xff]
  %v48 = vld [vmem:[%s2 + $0x48] sm:$0xff]
  %v49 = vld [vmem:[%s2 + $0x50] sm:$0xff]
  %v50 = vld [vmem:[%s2 + $0x58] sm:$0xff]
  %v51 = vld [vmem:[%s2 + $0x60] sm:$0xff]
  %v52 = vld [vmem:[%s2 + $0x68] sm:$0xff]
  %v53 = vld [vmem:[%s2 + $0x70] sm:$0xff]
  %v54 = vld [vmem:[%s2 + $0x78] sm:$0xff]
  %v55 = vld [vmem:[%s3] sm:$0xff]
  %v56 = vld [vmem:[%s3 + $0x8] sm:$0xff]
  %v57 = vld [vmem:[%s3 + $0x10] sm:$0xff]
  %v58 = vld [vmem:[%s3 + $0x18] sm:$0xff]
  %v59 = vld [vmem:[%s3 + $0x20] sm:$0xff]
  %v60 = vld [vmem:[%s3 + $0x28] sm:$0xff]
  %v61 = vld [vmem:[%s3 + $0x30] sm:$0xff]
  %v62 = vld [vmem:[%s3 + $0x38] sm:$0xff]
  %v63 = vld [vmem:[%s3 + $0x40] sm:$0xff]
  %v64 = vld [vmem:[%s3 + $0x48] sm:$0xff]
  %v65 = vld [vmem:[%s3 + $0x50] sm:$0xff]
  %v66 = vld [vmem:[%s3 + $0x58] sm:$0xff]
  %v67 = vld [vmem:[%s3 + $0x60] sm:$0xff]
  %v68 = vld [vmem:[%s3 + $0x68] sm:$0xff]
  %v69 = vld [vmem:[%s3 + $0x70] sm:$0xff]
  %v70 = vld [vmem:[%s3 + $0x78] sm:$0xff]
  %72 = vset.pattern.permute.xlu0 0
  %73 = vperm.xlu0 %72, %v55
  %v74 = vpop.permute.xlu0 %73
  %77 = vset.pattern.permute.xlu0 0
  %78 = vperm.xlu0 %77, %v56
  %v79 = vpop.permute.xlu0 %78
  %82 = vset.pattern.permute.xlu0 0
  %83 = vperm.xlu0 %82, %v57
  %v84 = vpop.permute.xlu0 %83
  %87 = vset.pattern.permute.xlu0 0
  %88 = vperm.xlu0 %87, %v58
  %v89 = vpop.permute.xlu0 %88
  %92 = vset.pattern.permute.xlu0 0
  %93 = vperm.xlu0 %92, %v59
  %v94 = vpop.permute.xlu0 %93
  %97 = vset.pattern.permute.xlu0 0
  %98 = vperm.xlu0 %97, %v60
  %v99 = vpop.permute.xlu0 %98
  %102 = vset.pattern.permute.xlu0 0
  %103 = vperm.xlu0 %102, %v61
  %v104 = vpop.permute.xlu0 %103
  %107 = vset.pattern.permute.xlu0 0
  %108 = vperm.xlu0 %107, %v62
  %v109 = vpop.permute.xlu0 %108
  %112 = vset.pattern.permute.xlu0 0
  %113 = vperm.xlu0 %112, %v63
  %v114 = vpop.permute.xlu0 %113
  %117 = vset.pattern.permute.xlu0 0
  %118 = vperm.xlu0 %117, %v64
  %v119 = vpop.permute.xlu0 %118
  %122 = vset.pattern.permute.xlu0 0
  %123 = vperm.xlu0 %122, %v65
  %v124 = vpop.permute.xlu0 %123
  %127 = vset.pattern.permute.xlu0 0
  %128 = vperm.xlu0 %127, %v66
  %v129 = vpop.permute.xlu0 %128
  %132 = vset.pattern.permute.xlu0 0
  %133 = vperm.xlu0 %132, %v67
  %v134 = vpop.permute.xlu0 %133
  %137 = vset.pattern.permute.xlu0 0
  %138 = vperm.xlu0 %137, %v68
  %v139 = vpop.permute.xlu0 %138
  %142 = vset.pattern.permute.xlu0 0
  %143 = vperm.xlu0 %142, %v69
  %v144 = vpop.permute.xlu0 %143
  %147 = vset.pattern.permute.xlu0 0
  %148 = vperm.xlu0 %147, %v70
  %v149 = vpop.permute.xlu0 %148
  %vm151 = vcmask 261120
  %v153 = vsel %vm151, %v39, 0
  %v156 = vsel %vm151, %v40, 0
  %v159 = vsel %vm151, %v41, 0
  %v162 = vsel %vm151, %v42, 0
  %v165 = vsel %vm151, %v43, 0
  %v168 = vsel %vm151, %v44, 0
  %v171 = vsel %vm151, %v45, 0
  %v174 = vsel %vm151, %v46, 0
  %v177 = vsel %vm151, %v47, 0
  %v180 = vsel %vm151, %v48, 0
  %v183 = vsel %vm151, %v49, 0
  %v186 = vsel %vm151, %v50, 0
  %v189 = vsel %vm151, %v51, 0
  %v192 = vsel %vm151, %v52, 0
  %v195 = vsel %vm151, %v53, 0
  %v198 = vsel %vm151, %v54, 0
  %200 = vmatprep.subr.mxu0 0.0
  %201 = vmatpush1.msra.mxu0 0.0
  %202 = vmatprep.subr.mxu0 0.0
  %203 = vmatpush1.msra.mxu0 0.0
  %204 = vmatprep.subr.mxu0 0.0
  %205 = vmatpush1.msra.mxu0 0.0
  %206 = vmatprep.subr.mxu0 0.0
  %207 = vmatpush1.msra.mxu0 0.0
  %208 = vmatprep.subr.mxu0 0.0
  %209 = vmatpush1.msra.mxu0 0.0
  %210 = vmatprep.subr.mxu0 0.0
  %211 = vmatpush1.msra.mxu0 0.0
  %212 = vmatprep.subr.mxu0 0.0
  %213 = vmatpush1.msra.mxu0 0.0
  %214 = vmatprep.subr.mxu0 0.0
  %215 = vmatpush1.msra.mxu0 0.0
  %216 = vmatprep.subr.mxu0 0.0
  %217 = vmatpush1.msra.mxu0 0.0
  %218 = vmatprep.subr.mxu0 0.0
  %219 = vmatpush1.msra.mxu0 0.0
  %220 = vmatprep.subr.mxu0 0.0
  %221 = vmatpush1.msra.mxu0 0.0
  %222 = vmatprep.subr.mxu0 0.0
  %223 = vmatpush1.msra.mxu0 0.0
  %224 = vmatprep.subr.mxu0 0.0
  %225 = vmatpush1.msra.mxu0 %v38
  %226 = vmatprep.subr.mxu0 0.0
  %227 = vmatpush1.msra.mxu0 %v37
  %228 = vmatprep.subr.mxu0 0.0
  %229 = vmatpush1.msra.mxu0 %v36
  %230 = vmatprep.subr.mxu0 0.0
  %231 = vmatpush1.msra.mxu0 %v35
  %232 = vmatprep.subr.mxu0 0.0
  %233 = vmatpush2.msra.mxu0 0.0
  %234 = vmatprep.subr.mxu0 0.0
  %235 = vmatpush2.msra.mxu0 0.0
  %236 = vmatprep.subr.mxu0 0.0
  %237 = vmatpush2.msra.mxu0 0.0
  %238 = vmatprep.subr.mxu0 0.0
  %239 = vmatpush2.msra.mxu0 0.0
  %240 = vmatprep.subr.mxu0 0.0
  %241 = vmatpush2.msra.mxu0 0.0
  %242 = vmatprep.subr.mxu0 0.0
  %243 = vmatpush2.msra.mxu0 0.0
  %244 = vmatprep.subr.mxu0 0.0
  %245 = vmatpush2.msra.mxu0 0.0
  %246 = vmatprep.subr.mxu0 0.0
  %247 = vmatpush2.msra.mxu0 0.0
  %248 = vmatprep.subr.mxu0 0.0
  %249 = vmatpush2.msra.mxu0 0.0
  %250 = vmatprep.subr.mxu0 0.0
  %251 = vmatpush2.msra.mxu0 0.0
  %252 = vmatprep.subr.mxu0 0.0
  %253 = vmatpush2.msra.mxu0 0.0
  %254 = vmatprep.subr.mxu0 0.0
  %255 = vmatpush2.msra.mxu0 0.0
  %256 = vmatprep.subr.mxu0 0.0
  %257 = vmatpush2.msra.mxu0 0.0
  %258 = vmatprep.subr.mxu0 0.0
  %259 = vmatpush2.msra.mxu0 0.0
  %260 = vmatprep.subr.mxu0 0.0
  %261 = vmatpush2.msra.mxu0 0.0
  %262 = vmatprep.subr.mxu0 0.0
  %263 = vmatpush2.msra.mxu0 0.0
  %264 = vmatprep.mubr.f32.mxu0 0.0
  %265 = vmatmul.mubr.f32.gmra.mxu0 %v153
  %v266 = vpop.f32.mrf.mxu0
  %v267 = vadd.f32 %v74, %v266
  %v268 = vpop.f32.mrf.mxu0
  %269 = vmatprep.mubr.f32.mxu0 0.0
  %270 = vmatmul.mubr.f32.gmra.mxu0 %v156
  %v271 = vpop.f32.mrf.mxu0
  %v272 = vadd.f32 %v79, %v271
  %v273 = vpop.f32.mrf.mxu0
  %274 = vmatprep.mubr.f32.mxu0 0.0
  %275 = vmatmul.mubr.f32.gmra.mxu0 %v159
  %v276 = vpop.f32.mrf.mxu0
  %v277 = vadd.f32 %v84, %v276
  %v278 = vpop.f32.mrf.mxu0
  %279 = vmatprep.mubr.f32.mxu0 0.0
  %280 = vmatmul.mubr.f32.gmra.mxu0 %v162
  %v281 = vpop.f32.mrf.mxu0
  %v282 = vadd.f32 %v89, %v281
  %v283 = vpop.f32.mrf.mxu0
  %284 = vmatprep.mubr.f32.mxu0 0.0
  %285 = vmatmul.mubr.f32.gmra.mxu0 %v165
  %v286 = vpop.f32.mrf.mxu0
  %v287 = vadd.f32 %v94, %v286
  %v288 = vpop.f32.mrf.mxu0
  %289 = vmatprep.mubr.f32.mxu0 0.0
  %290 = vmatmul.mubr.f32.gmra.mxu0 %v168
  %v291 = vpop.f32.mrf.mxu0
  %v292 = vadd.f32 %v99, %v291
  %v293 = vpop.f32.mrf.mxu0
  %294 = vmatprep.mubr.f32.mxu0 0.0
  %295 = vmatmul.mubr.f32.gmra.mxu0 %v171
  %v296 = vpop.f32.mrf.mxu0
  %v297 = vadd.f32 %v104, %v296
  %v298 = vpop.f32.mrf.mxu0
  %299 = vmatprep.mubr.f32.mxu0 0.0
  %300 = vmatmul.mubr.f32.gmra.mxu0 %v174
  %v301 = vpop.f32.mrf.mxu0
  %v302 = vadd.f32 %v109, %v301
  %v303 = vpop.f32.mrf.mxu0
  %304 = vmatprep.mubr.f32.mxu0 0.0
  %305 = vmatmul.mubr.f32.gmra.mxu0 %v177
  %v306 = vpop.f32.mrf.mxu0
  %v307 = vadd.f32 %v114, %v306
  %v308 = vpop.f32.mrf.mxu0
  %309 = vmatprep.mubr.f32.mxu0 0.0
  %310 = vmatmul.mubr.f32.gmra.mxu0 %v180
  %v311 = vpop.f32.mrf.mxu0
  %v312 = vadd.f32 %v119, %v311
  %v313 = vpop.f32.mrf.mxu0
  %314 = vmatprep.mubr.f32.mxu0 0.0
  %315 = vmatmul.mubr.f32.gmra.mxu0 %v183
  %v316 = vpop.f32.mrf.mxu0
  %v317 = vadd.f32 %v124, %v316
  %v318 = vpop.f32.mrf.mxu0
  %319 = vmatprep.mubr.f32.mxu0 0.0
  %320 = vmatmul.mubr.f32.gmra.mxu0 %v186
  %v321 = vpop.f32.mrf.mxu0
  %v322 = vadd.f32 %v129, %v321
  %v323 = vpop.f32.mrf.mxu0
  %324 = vmatprep.mubr.f32.mxu0 0.0
  %325 = vmatmul.mubr.f32.gmra.mxu0 %v189
  %v326 = vpop.f32.mrf.mxu0
  %v327 = vadd.f32 %v134, %v326
  %v328 = vpop.f32.mrf.mxu0
  %329 = vmatprep.mubr.f32.mxu0 0.0
  %330 = vmatmul.mubr.f32.gmra.mxu0 %v192
  %v331 = vpop.f32.mrf.mxu0
  %v332 = vadd.f32 %v139, %v331
  %v333 = vpop.f32.mrf.mxu0
  %334 = vmatprep.mubr.f32.mxu0 0.0
  %335 = vmatmul.mubr.f32.gmra.mxu0 %v195
  %v336 = vpop.f32.mrf.mxu0
  %v337 = vadd.f32 %v144, %v336
  %v338 = vpop.f32.mrf.mxu0
  %339 = vmatprep.mubr.f32.mxu0 0.0
  %340 = vmatmul.mubr.f32.gmra.mxu0 %v198
  %v341 = vpop.f32.mrf.mxu0
  %v342 = vadd.f32 %v149, %v341
  %v343 = vpop.f32.mrf.mxu0
  %344 = vdwg.mxu0
  %v345 = vtanh.pop %v267
  %v346 = vtanh.pop %v272
  %v347 = vtanh.pop %v277
  %v348 = vtanh.pop %v282
  %v349 = vtanh.pop %v287
  %v350 = vtanh.pop %v292
  %v351 = vtanh.pop %v297
  %v352 = vtanh.pop %v302
  %v353 = vtanh.pop %v307
  %v354 = vtanh.pop %v312
  %v355 = vtanh.pop %v317
  %v356 = vtanh.pop %v322
  %v357 = vtanh.pop %v327
  %v358 = vtanh.pop %v332
  %v359 = vtanh.pop %v337
  %v360 = vtanh.pop %v342
  %v361 = vld [vmem:[%s4] sm:$0xff]
  %v362 = vld [vmem:[%s4 + $0x8] sm:$0xff]
  %v363 = vld [vmem:[%s4 + $0x10] sm:$0xff]
  %v364 = vld [vmem:[%s4 + $0x18] sm:$0xff]
  %v365 = vld [vmem:[%s5] sm:$0xff]
  %v366 = vld [vmem:[%s5 + $0x8] sm:$0xff]
  %v367 = vld [vmem:[%s5 + $0x10] sm:$0xff]
  %v368 = vld [vmem:[%s5 + $0x18] sm:$0xff]
  %370 = vset.pattern.permute.xlu0 0
  %371 = vperm.xlu0 %370, %v365
  %v372 = vpop.permute.xlu0 %371
  %375 = vset.pattern.permute.xlu0 0
  %376 = vperm.xlu0 %375, %v366
  %v377 = vpop.permute.xlu0 %376
  %380 = vset.pattern.permute.xlu0 0
  %381 = vperm.xlu0 %380, %v367
  %v382 = vpop.permute.xlu0 %381
  %385 = vset.pattern.permute.xlu0 0
  %386 = vperm.xlu0 %385, %v368
  %v387 = vpop.permute.xlu0 %386
  %389 = vmatprep.subr.mxu0 0.0
  %390 = vmatpush1.msra.mxu0 %v360
  %391 = vmatprep.subr.mxu0 0.0
  %392 = vmatpush1.msra.mxu0 %v359
  %393 = vmatprep.subr.mxu0 0.0
  %394 = vmatpush1.msra.mxu0 %v358
  %395 = vmatprep.subr.mxu0 0.0
  %396 = vmatpush1.msra.mxu0 %v357
  %397 = vmatprep.subr.mxu0 0.0
  %398 = vmatpush1.msra.mxu0 %v356
  %399 = vmatprep.subr.mxu0 0.0
  %400 = vmatpush1.msra.mxu0 %v355
  %401 = vmatprep.subr.mxu0 0.0
  %402 = vmatpush1.msra.mxu0 %v354
  %403 = vmatprep.subr.mxu0 0.0
  %404 = vmatpush1.msra.mxu0 %v353
  %405 = vmatprep.subr.mxu0 0.0
  %406 = vmatpush1.msra.mxu0 %v352
  %407 = vmatprep.subr.mxu0 0.0
  %408 = vmatpush1.msra.mxu0 %v351
  %409 = vmatprep.subr.mxu0 0.0
  %410 = vmatpush1.msra.mxu0 %v350
  %411 = vmatprep.subr.mxu0 0.0
  %412 = vmatpush1.msra.mxu0 %v349
  %413 = vmatprep.subr.mxu0 0.0
  %414 = vmatpush1.msra.mxu0 %v348
  %415 = vmatprep.subr.mxu0 0.0
  %416 = vmatpush1.msra.mxu0 %v347
  %417 = vmatprep.subr.mxu0 0.0
  %418 = vmatpush1.msra.mxu0 %v346
  %419 = vmatprep.subr.mxu0 0.0
  %420 = vmatpush1.msra.mxu0 %v345
  %421 = vmatprep.subr.mxu0 0.0
  %422 = vmatpush2.msra.mxu0 0.0
  %423 = vmatprep.subr.mxu0 0.0
  %424 = vmatpush2.msra.mxu0 0.0
  %425 = vmatprep.subr.mxu0 0.0
  %426 = vmatpush2.msra.mxu0 0.0
  %427 = vmatprep.subr.mxu0 0.0
  %428 = vmatpush2.msra.mxu0 0.0
  %429 = vmatprep.subr.mxu0 0.0
  %430 = vmatpush2.msra.mxu0 0.0
  %431 = vmatprep.subr.mxu0 0.0
  %432 = vmatpush2.msra.mxu0 0.0
  %433 = vmatprep.subr.mxu0 0.0
  %434 = vmatpush2.msra.mxu0 0.0
  %435 = vmatprep.subr.mxu0 0.0
  %436 = vmatpush2.msra.mxu0 0.0
  %437 = vmatprep.subr.mxu0 0.0
  %438 = vmatpush2.msra.mxu0 0.0
  %439 = vmatprep.subr.mxu0 0.0
  %440 = vmatpush2.msra.mxu0 0.0
  %441 = vmatprep.subr.mxu0 0.0
  %442 = vmatpush2.msra.mxu0 0.0
  %443 = vmatprep.subr.mxu0 0.0
  %444 = vmatpush2.msra.mxu0 0.0
  %445 = vmatprep.subr.mxu0 0.0
  %446 = vmatpush2.msra.mxu0 0.0
  %447 = vmatprep.subr.mxu0 0.0
  %448 = vmatpush2.msra.mxu0 0.0
  %449 = vmatprep.subr.mxu0 0.0
  %450 = vmatpush2.msra.mxu0 0.0
  %451 = vmatprep.subr.mxu0 0.0
  %452 = vmatpush2.msra.mxu0 0.0
  %453 = vmatprep.mubr.f32.mxu0 0.0
  %454 = vmatmul.mubr.f32.gmra.mxu0 %v361
  %v455 = vpop.f32.mrf.mxu0
  %v456 = vadd.f32 %v372, %v455
  %v457 = vpop.f32.mrf.mxu0
  %458 = vmatprep.mubr.f32.mxu0 0.0
  %459 = vmatmul.mubr.f32.gmra.mxu0 %v362
  %v460 = vpop.f32.mrf.mxu0
  %v461 = vadd.f32 %v377, %v460
  %v462 = vpop.f32.mrf.mxu0
  %463 = vmatprep.mubr.f32.mxu0 0.0
  %464 = vmatmul.mubr.f32.gmra.mxu0 %v363
  %v465 = vpop.f32.mrf.mxu0
  %v466 = vadd.f32 %v382, %v465
  %v467 = vpop.f32.mrf.mxu0
  %468 = vmatprep.mubr.f32.mxu0 0.0
  %469 = vmatmul.mubr.f32.gmra.mxu0 %v364
  %v470 = vpop.f32.mrf.mxu0
  %v471 = vadd.f32 %v387, %v470
  %v472 = vpop.f32.mrf.mxu0
  %473 = vdwg.mxu0
  %v474 = vld [vmem:[%s1] sm:$0xff]
  %v475 = vld [vmem:[%s1 + $0x8] sm:$0xff]
  %v476 = vmul.f32 %v466, 0.5
  %v477 = vmul.f32 %v471, 0.5
  %v478 = vmul.f32 %v476, 1.442695
  %v479 = vpow.pop %v478
  %v480 = vmul.f32 %v477, 1.442695
  %v481 = vpow.pop %v480
  %v482 = vmul.f32 %v474, %v479
  %v483 = vmul.f32 %v475, %v481
  %v484 = vadd.f32 %v456, %v482
  %v485 = vadd.f32 %v461, %v483
  %v486 = vld [vmem:[%s6] sm:$0xff]
  %v487 = vld [vmem:[%s6 + $0x8] sm:$0xff]
  %v488 = vld [vmem:[%s6 + $0x10] sm:$0xff]
  %v489 = vld [vmem:[%s6 + $0x18] sm:$0xff]
  %v490 = vld [vmem:[%s6 + $0x20] sm:$0xff]
  %v491 = vld [vmem:[%s6 + $0x28] sm:$0xff]
  %v492 = vld [vmem:[%s6 + $0x30] sm:$0xff]
  %v493 = vld [vmem:[%s6 + $0x38] sm:$0xff]
  %v494 = vld [vmem:[%s6 + $0x40] sm:$0xff]
  %v495 = vld [vmem:[%s6 + $0x48] sm:$0xff]
  %v496 = vld [vmem:[%s6 + $0x50] sm:$0xff]
  %v497 = vld [vmem:[%s6 + $0x58] sm:$0xff]
  %v498 = vld [vmem:[%s6 + $0x60] sm:$0xff]
  %v499 = vld [vmem:[%s6 + $0x68] sm:$0xff]
  %v500 = vld [vmem:[%s6 + $0x70] sm:$0xff]
  %v501 = vld [vmem:[%s6 + $0x78] sm:$0xff]
  %v502 = vld [vmem:[%s7] sm:$0xff]
  %v503 = vld [vmem:[%s7 + $0x8] sm:$0xff]
  %v504 = vld [vmem:[%s7 + $0x10] sm:$0xff]
  %v505 = vld [vmem:[%s7 + $0x18] sm:$0xff]
  %v506 = vld [vmem:[%s7 + $0x20] sm:$0xff]
  %v507 = vld [vmem:[%s7 + $0x28] sm:$0xff]
  %v508 = vld [vmem:[%s7 + $0x30] sm:$0xff]
  %v509 = vld [vmem:[%s7 + $0x38] sm:$0xff]
  %v510 = vld [vmem:[%s7 + $0x40] sm:$0xff]
  %v511 = vld [vmem:[%s7 + $0x48] sm:$0xff]
  %v512 = vld [vmem:[%s7 + $0x50] sm:$0xff]
  %v513 = vld [vmem:[%s7 + $0x58] sm:$0xff]
  %v514 = vld [vmem:[%s7 + $0x60] sm:$0xff]
  %v515 = vld [vmem:[%s7 + $0x68] sm:$0xff]
  %v516 = vld [vmem:[%s7 + $0x70] sm:$0xff]
  %v517 = vld [vmem:[%s7 + $0x78] sm:$0xff]
  %519 = vset.pattern.permute.xlu0 0
  %520 = vperm.xlu0 %519, %v502
  %v521 = vpop.permute.xlu0 %520
  %524 = vset.pattern.permute.xlu0 0
  %525 = vperm.xlu0 %524, %v503
  %v526 = vpop.permute.xlu0 %525
  %529 = vset.pattern.permute.xlu0 0
  %530 = vperm.xlu0 %529, %v504
  %v531 = vpop.permute.xlu0 %530
  %534 = vset.pattern.permute.xlu0 0
  %535 = vperm.xlu0 %534, %v505
  %v536 = vpop.permute.xlu0 %535
  %539 = vset.pattern.permute.xlu0 0
  %540 = vperm.xlu0 %539, %v506
  %v541 = vpop.permute.xlu0 %540
  %544 = vset.pattern.permute.xlu0 0
  %545 = vperm.xlu0 %544, %v507
  %v546 = vpop.permute.xlu0 %545
  %549 = vset.pattern.permute.xlu0 0
  %550 = vperm.xlu0 %549, %v508
  %v551 = vpop.permute.xlu0 %550
  %554 = vset.pattern.permute.xlu0 0
  %555 = vperm.xlu0 %554, %v509
  %v556 = vpop.permute.xlu0 %555
  %559 = vset.pattern.permute.xlu0 0
  %560 = vperm.xlu0 %559, %v510
  %v561 = vpop.permute.xlu0 %560
  %564 = vset.pattern.permute.xlu0 0
  %565 = vperm.xlu0 %564, %v511
  %v566 = vpop.permute.xlu0 %565
  %569 = vset.pattern.permute.xlu0 0
  %570 = vperm.xlu0 %569, %v512
  %v571 = vpop.permute.xlu0 %570
  %574 = vset.pattern.permute.xlu0 0
  %575 = vperm.xlu0 %574, %v513
  %v576 = vpop.permute.xlu0 %575
  %579 = vset.pattern.permute.xlu0 0
  %580 = vperm.xlu0 %579, %v514
  %v581 = vpop.permute.xlu0 %580
  %584 = vset.pattern.permute.xlu0 0
  %585 = vperm.xlu0 %584, %v515
  %v586 = vpop.permute.xlu0 %585
  %589 = vset.pattern.permute.xlu0 0
  %590 = vperm.xlu0 %589, %v516
  %v591 = vpop.permute.xlu0 %590
  %594 = vset.pattern.permute.xlu0 0
  %595 = vperm.xlu0 %594, %v517
  %v596 = vpop.permute.xlu0 %595
  %vm598 = vcmask 130048
  %v600 = vsel %vm598, %v486, 0
  %v603 = vsel %vm598, %v487, 0
  %v606 = vsel %vm598, %v488, 0
  %v609 = vsel %vm598, %v489, 0
  %v612 = vsel %vm598, %v490, 0
  %v615 = vsel %vm598, %v491, 0
  %v618 = vsel %vm598, %v492, 0
  %v621 = vsel %vm598, %v493, 0
  %v624 = vsel %vm598, %v494, 0
  %v627 = vsel %vm598, %v495, 0
  %v630 = vsel %vm598, %v496, 0
  %v633 = vsel %vm598, %v497, 0
  %v636 = vsel %vm598, %v498, 0
  %v639 = vsel %vm598, %v499, 0
  %v642 = vsel %vm598, %v500, 0
  %v645 = vsel %vm598, %v501, 0
  %647 = vmatprep.subr.mxu0 0.0
  %648 = vmatpush1.msra.mxu0 0.0
  %649 = vmatprep.subr.mxu0 0.0
  %650 = vmatpush1.msra.mxu0 0.0
  %651 = vmatprep.subr.mxu0 0.0
  %652 = vmatpush1.msra.mxu0 0.0
  %653 = vmatprep.subr.mxu0 0.0
  %654 = vmatpush1.msra.mxu0 0.0
  %655 = vmatprep.subr.mxu0 0.0
  %656 = vmatpush1.msra.mxu0 0.0
  %657 = vmatprep.subr.mxu0 0.0
  %658 = vmatpush1.msra.mxu0 0.0
  %659 = vmatprep.subr.mxu0 0.0
  %660 = vmatpush1.msra.mxu0 0.0
  %661 = vmatprep.subr.mxu0 0.0
  %662 = vmatpush1.msra.mxu0 0.0
  %663 = vmatprep.subr.mxu0 0.0
  %664 = vmatpush1.msra.mxu0 0.0
  %665 = vmatprep.subr.mxu0 0.0
  %666 = vmatpush1.msra.mxu0 0.0
  %667 = vmatprep.subr.mxu0 0.0
  %668 = vmatpush1.msra.mxu0 0.0
  %669 = vmatprep.subr.mxu0 0.0
  %670 = vmatpush1.msra.mxu0 0.0
  %671 = vmatprep.subr.mxu0 0.0
  %672 = vmatpush1.msra.mxu0 0.0
  %673 = vmatprep.subr.mxu0 0.0
  %674 = vmatpush1.msra.mxu0 0.0
  %675 = vmatprep.subr.mxu0 0.0
  %676 = vmatpush1.msra.mxu0 %v485
  %677 = vmatprep.subr.mxu0 0.0
  %678 = vmatpush1.msra.mxu0 %v484
  %679 = vmatprep.subr.mxu0 0.0
  %680 = vmatpush2.msra.mxu0 0.0
  %681 = vmatprep.subr.mxu0 0.0
  %682 = vmatpush2.msra.mxu0 0.0
  %683 = vmatprep.subr.mxu0 0.0
  %684 = vmatpush2.msra.mxu0 0.0
  %685 = vmatprep.subr.mxu0 0.0
  %686 = vmatpush2.msra.mxu0 0.0
  %687 = vmatprep.subr.mxu0 0.0
  %688 = vmatpush2.msra.mxu0 0.0
  %689 = vmatprep.subr.mxu0 0.0
  %690 = vmatpush2.msra.mxu0 0.0
  %691 = vmatprep.subr.mxu0 0.0
  %692 = vmatpush2.msra.mxu0 0.0
  %693 = vmatprep.subr.mxu0 0.0
  %694 = vmatpush2.msra.mxu0 0.0
  %695 = vmatprep.subr.mxu0 0.0
  %696 = vmatpush2.msra.mxu0 0.0
  %697 = vmatprep.subr.mxu0 0.0
  %698 = vmatpush2.msra.mxu0 0.0
  %699 = vmatprep.subr.mxu0 0.0
  %700 = vmatpush2.msra.mxu0 0.0
  %701 = vmatprep.subr.mxu0 0.0
  %702 = vmatpush2.msra.mxu0 0.0
  %703 = vmatprep.subr.mxu0 0.0
  %704 = vmatpush2.msra.mxu0 0.0
  %705 = vmatprep.subr.mxu0 0.0
  %706 = vmatpush2.msra.mxu0 0.0
  %707 = vmatprep.subr.mxu0 0.0
  %708 = vmatpush2.msra.mxu0 0.0
  %709 = vmatprep.subr.mxu0 0.0
  %710 = vmatpush2.msra.mxu0 0.0
  %711 = vmatprep.mubr.f32.mxu0 0.0
  %712 = vmatmul.mubr.f32.gmra.mxu0 %v600
  %v713 = vpop.f32.mrf.mxu0
  %v714 = vadd.f32 %v521, %v713
  %v715 = vpop.f32.mrf.mxu0
  %716 = vmatprep.mubr.f32.mxu0 0.0
  %717 = vmatmul.mubr.f32.gmra.mxu0 %v603
  %v718 = vpop.f32.mrf.mxu0
  %v719 = vadd.f32 %v526, %v718
  %v720 = vpop.f32.mrf.mxu0
  %721 = vmatprep.mubr.f32.mxu0 0.0
  %722 = vmatmul.mubr.f32.gmra.mxu0 %v606
  %v723 = vpop.f32.mrf.mxu0
  %v724 = vadd.f32 %v531, %v723
  %v725 = vpop.f32.mrf.mxu0
  %726 = vmatprep.mubr.f32.mxu0 0.0
  %727 = vmatmul.mubr.f32.gmra.mxu0 %v609
  %v728 = vpop.f32.mrf.mxu0
  %v729 = vadd.f32 %v536, %v728
  %v730 = vpop.f32.mrf.mxu0
  %731 = vmatprep.mubr.f32.mxu0 0.0
  %732 = vmatmul.mubr.f32.gmra.mxu0 %v612
  %v733 = vpop.f32.mrf.mxu0
  %v734 = vadd.f32 %v541, %v733
  %v735 = vpop.f32.mrf.mxu0
  %736 = vmatprep.mubr.f32.mxu0 0.0
  %737 = vmatmul.mubr.f32.gmra.mxu0 %v615
  %v738 = vpop.f32.mrf.mxu0
  %v739 = vadd.f32 %v546, %v738
  %v740 = vpop.f32.mrf.mxu0
  %741 = vmatprep.mubr.f32.mxu0 0.0
  %742 = vmatmul.mubr.f32.gmra.mxu0 %v618
  %v743 = vpop.f32.mrf.mxu0
  %v744 = vadd.f32 %v551, %v743
  %v745 = vpop.f32.mrf.mxu0
  %746 = vmatprep.mubr.f32.mxu0 0.0
  %747 = vmatmul.mubr.f32.gmra.mxu0 %v621
  %v748 = vpop.f32.mrf.mxu0
  %v749 = vadd.f32 %v556, %v748
  %v750 = vpop.f32.mrf.mxu0
  %751 = vmatprep.mubr.f32.mxu0 0.0
  %752 = vmatmul.mubr.f32.gmra.mxu0 %v624
  %v753 = vpop.f32.mrf.mxu0
  %v754 = vadd.f32 %v561, %v753
  %v755 = vpop.f32.mrf.mxu0
  %756 = vmatprep.mubr.f32.mxu0 0.0
  %757 = vmatmul.mubr.f32.gmra.mxu0 %v627
  %v758 = vpop.f32.mrf.mxu0
  %v759 = vadd.f32 %v566, %v758
  %v760 = vpop.f32.mrf.mxu0
  %761 = vmatprep.mubr.f32.mxu0 0.0
  %762 = vmatmul.mubr.f32.gmra.mxu0 %v630
  %v763 = vpop.f32.mrf.mxu0
  %v764 = vadd.f32 %v571, %v763
  %v765 = vpop.f32.mrf.mxu0
  %766 = vmatprep.mubr.f32.mxu0 0.0
  %767 = vmatmul.mubr.f32.gmra.mxu0 %v633
  %v768 = vpop.f32.mrf.mxu0
  %v769 = vadd.f32 %v576, %v768
  %v770 = vpop.f32.mrf.mxu0
  %771 = vmatprep.mubr.f32.mxu0 0.0
  %772 = vmatmul.mubr.f32.gmra.mxu0 %v636
  %v773 = vpop.f32.mrf.mxu0
  %v774 = vadd.f32 %v581, %v773
  %v775 = vpop.f32.mrf.mxu0
  %776 = vmatprep.mubr.f32.mxu0 0.0
  %777 = vmatmul.mubr.f32.gmra.mxu0 %v639
  %v778 = vpop.f32.mrf.mxu0
  %v779 = vadd.f32 %v586, %v778
  %v780 = vpop.f32.mrf.mxu0
  %781 = vmatprep.mubr.f32.mxu0 0.0
  %782 = vmatmul.mubr.f32.gmra.mxu0 %v642
  %v783 = vpop.f32.mrf.mxu0
  %v784 = vadd.f32 %v591, %v783
  %v785 = vpop.f32.mrf.mxu0
  %786 = vmatprep.mubr.f32.mxu0 0.0
  %787 = vmatmul.mubr.f32.gmra.mxu0 %v645
  %v788 = vpop.f32.mrf.mxu0
  %v789 = vadd.f32 %v596, %v788
  %v790 = vpop.f32.mrf.mxu0
  %791 = vdwg.mxu0
  %v792 = vtanh.pop %v714
  %v793 = vtanh.pop %v719
  %v794 = vtanh.pop %v724
  %v795 = vtanh.pop %v729
  %v796 = vtanh.pop %v734
  %v797 = vtanh.pop %v739
  %v798 = vtanh.pop %v744
  %v799 = vtanh.pop %v749
  %v800 = vtanh.pop %v754
  %v801 = vtanh.pop %v759
  %v802 = vtanh.pop %v764
  %v803 = vtanh.pop %v769
  %v804 = vtanh.pop %v774
  %v805 = vtanh.pop %v779
  %v806 = vtanh.pop %v784
  %v807 = vtanh.pop %v789
  %v808 = vld [vmem:[%s8] sm:$0xff]
  %v809 = vld [vmem:[%s8 + $0x8] sm:$0xff]
  %v810 = vld [vmem:[%s8 + $0x10] sm:$0xff]
  %v811 = vld [vmem:[%s8 + $0x18] sm:$0xff]
  %v812 = vld [vmem:[%s9] sm:$0xff]
  %v813 = vld [vmem:[%s9 + $0x8] sm:$0xff]
  %v814 = vld [vmem:[%s9 + $0x10] sm:$0xff]
  %v815 = vld [vmem:[%s9 + $0x18] sm:$0xff]
  %817 = vset.pattern.permute.xlu0 0
  %818 = vperm.xlu0 %817, %v812
  %v819 = vpop.permute.xlu0 %818
  %822 = vset.pattern.permute.xlu0 0
  %823 = vperm.xlu0 %822, %v813
  %v824 = vpop.permute.xlu0 %823
  %827 = vset.pattern.permute.xlu0 0
  %828 = vperm.xlu0 %827, %v814
  %v829 = vpop.permute.xlu0 %828
  %832 = vset.pattern.permute.xlu0 0
  %833 = vperm.xlu0 %832, %v815
  %v834 = vpop.permute.xlu0 %833
  %836 = vmatprep.subr.mxu0 0.0
  %837 = vmatpush1.msra.mxu0 %v807
  %838 = vmatprep.subr.mxu0 0.0
  %839 = vmatpush1.msra.mxu0 %v806
  %840 = vmatprep.subr.mxu0 0.0
  %841 = vmatpush1.msra.mxu0 %v805
  %842 = vmatprep.subr.mxu0 0.0
  %843 = vmatpush1.msra.mxu0 %v804
  %844 = vmatprep.subr.mxu0 0.0
  %845 = vmatpush1.msra.mxu0 %v803
  %846 = vmatprep.subr.mxu0 0.0
  %847 = vmatpush1.msra.mxu0 %v802
  %848 = vmatprep.subr.mxu0 0.0
  %849 = vmatpush1.msra.mxu0 %v801
  %850 = vmatprep.subr.mxu0 0.0
  %851 = vmatpush1.msra.mxu0 %v800
  %852 = vmatprep.subr.mxu0 0.0
  %853 = vmatpush1.msra.mxu0 %v799
  %854 = vmatprep.subr.mxu0 0.0
  %855 = vmatpush1.msra.mxu0 %v798
  %856 = vmatprep.subr.mxu0 0.0
  %857 = vmatpush1.msra.mxu0 %v797
  %858 = vmatprep.subr.mxu0 0.0
  %859 = vmatpush1.msra.mxu0 %v796
  %860 = vmatprep.subr.mxu0 0.0
  %861 = vmatpush1.msra.mxu0 %v795
  %862 = vmatprep.subr.mxu0 0.0
  %863 = vmatpush1.msra.mxu0 %v794
  %864 = vmatprep.subr.mxu0 0.0
  %865 = vmatpush1.msra.mxu0 %v793
  %866 = vmatprep.subr.mxu0 0.0
  %867 = vmatpush1.msra.mxu0 %v792
  %868 = vmatprep.subr.mxu0 0.0
  %869 = vmatpush2.msra.mxu0 0.0
  %870 = vmatprep.subr.mxu0 0.0
  %871 = vmatpush2.msra.mxu0 0.0
  %872 = vmatprep.subr.mxu0 0.0
  %873 = vmatpush2.msra.mxu0 0.0
  %874 = vmatprep.subr.mxu0 0.0
  %875 = vmatpush2.msra.mxu0 0.0
  %876 = vmatprep.subr.mxu0 0.0
  %877 = vmatpush2.msra.mxu0 0.0
  %878 = vmatprep.subr.mxu0 0.0
  %879 = vmatpush2.msra.mxu0 0.0
  %880 = vmatprep.subr.mxu0 0.0
  %881 = vmatpush2.msra.mxu0 0.0
  %882 = vmatprep.subr.mxu0 0.0
  %883 = vmatpush2.msra.mxu0 0.0
  %884 = vmatprep.subr.mxu0 0.0
  %885 = vmatpush2.msra.mxu0 0.0
  %886 = vmatprep.subr.mxu0 0.0
  %887 = vmatpush2.msra.mxu0 0.0
  %888 = vmatprep.subr.mxu0 0.0
  %889 = vmatpush2.msra.mxu0 0.0
  %890 = vmatprep.subr.mxu0 0.0
  %891 = vmatpush2.msra.mxu0 0.0
  %892 = vmatprep.subr.mxu0 0.0
  %893 = vmatpush2.msra.mxu0 0.0
  %894 = vmatprep.subr.mxu0 0.0
  %895 = vmatpush2.msra.mxu0 0.0
  %896 = vmatprep.subr.mxu0 0.0
  %897 = vmatpush2.msra.mxu0 0.0
  %898 = vmatprep.subr.mxu0 0.0
  %899 = vmatpush2.msra.mxu0 0.0
  %900 = vmatprep.mubr.f32.mxu0 0.0
  %901 = vmatmul.mubr.f32.gmra.mxu0 %v808
  %v902 = vpop.f32.mrf.mxu0
  %v903 = vadd.f32 %v819, %v902
  %v904 = vpop.f32.mrf.mxu0
  %905 = vmatprep.mubr.f32.mxu0 0.0
  %906 = vmatmul.mubr.f32.gmra.mxu0 %v809
  %v907 = vpop.f32.mrf.mxu0
  %v908 = vadd.f32 %v824, %v907
  %v909 = vpop.f32.mrf.mxu0
  %910 = vmatprep.mubr.f32.mxu0 0.0
  %911 = vmatmul.mubr.f32.gmra.mxu0 %v810
  %v912 = vpop.f32.mrf.mxu0
  %v913 = vadd.f32 %v829, %v912
  %v914 = vpop.f32.mrf.mxu0
  %915 = vmatprep.mubr.f32.mxu0 0.0
  %916 = vmatmul.mubr.f32.gmra.mxu0 %v811
  %v917 = vpop.f32.mrf.mxu0
  %v918 = vadd.f32 %v834, %v917
  %v919 = vpop.f32.mrf.mxu0
  %920 = vdwg.mxu0
  %v921 = vmul.f32 %v903, 1.442695
  %v922 = vpow.pop %v921
  %v923 = vmul.f32 %v908, 1.442695
  %v924 = vpow.pop %v923
  %v925 = vmul.f32 %v913, 1.442695
  %v926 = vpow.pop %v925
  %v927 = vmul.f32 %v918, 1.442695
  %v928 = vpow.pop %v927
  %929 = vst [vmem:[%s10] sm:$0xff] %v922
  %930 = vst [vmem:[%s10 + $0x8] sm:$0xff] %v924
  %931 = vst [vmem:[%s10 + $0x10] sm:$0xff] %v926
  %932 = vst [vmem:[%s10 + $0x18] sm:$0xff] %v928
  // Predicated region
  $region42: #{vae_forward.1} parent=0 // pred_check
    _
  $region43: #{vae_forward.1} parent=0 // pred_check_branch
    %934 = sbr.rel (0) target = $region45
  $region44: #{vae_forward.1} parent=0 // pred_region
    _
  $region45: #{vae_forward.1} parent=0 // pred_fallthru
    _
  // Predicated region
  $region46: #{vae_forward.1} parent=0 // pred_check
    _
  $region47: #{vae_forward.1} parent=0 // pred_check_branch
    %936 = sbr.rel (0) target = $region49
  $region48: #{vae_forward.1} parent=0 // pred_region
    _
  $region49: #{vae_forward.1} parent=0 // pred_fallthru
    _

</llo_original>
